<compile_context>
chip_gen: v7x
topology: tpu7x:2x2x1
jax: 0.10.0
libtpu: 0.0.40
codegen_flags: <defaults>
</compile_context>

<pallas_src>
import jax
import jax.numpy as jnp
from jax import lax
from jax.experimental import pallas as pl
from jax.experimental.pallas import tpu as pltpu


def _attention_kernel(hidden_ref, enc_ref, params_ref, out_ref):
    # hidden_ref: (B, 2H)          enc_ref: (B*S, H)   (flattened batch*src_len)
    # params_ref: (3H+16, H)       packed [wh | we | b (row 3H) | v (row 3H+8)]
    # out_ref:    (B, S)
    B, S = out_ref.shape
    H = params_ref.shape[1]

    # Static, tile-aligned slices of the packed parameter buffer (zero-cost views).
    wh = params_ref[0:2 * H, :]                  # (2H, H) acts on the hidden part
    we = params_ref[2 * H:3 * H, :]              # (H, H)  acts on the encoder part
    b = params_ref[3 * H:3 * H + 1, :]           # (1, H)  bias row
    v = params_ref[3 * H + 8:3 * H + 9, :]       # (1, H)  score-projection row

    # Hidden projection with the bias folded in once: (B, H).
    hb = jnp.dot(hidden_ref[...], wh,
                 preferred_element_type=jnp.float32,
                 precision=lax.Precision.HIGHEST) + b

    # Encoder projection as ONE flat 2-D MXU matmul: (B*S, H) @ (H, H).
    e_proj = jnp.dot(enc_ref[...], we,
                     preferred_element_type=jnp.float32,
                     precision=lax.Precision.HIGHEST)

    # Broadcast the small (B, H) hidden projection across S (sublane broadcast
    # of the small operand; e_proj stays flat and untouched), then EUP tanh.
    hb_rep = jnp.broadcast_to(hb[:, None, :], (B, S, H)).reshape(B * S, H)
    energy = jnp.tanh(e_proj + hb_rep)            # (B*S, H)

    # Score projection on the VPU/XLU (N=1 -> no MXU):
    #   scores[b, s] = sum_h energy[b*S + s, h] * v[h]
    scores = jnp.sum((energy * v).reshape(B, S, H), axis=-1)  # (B, S)

    # Numerically-stable softmax over src_len (dim=1). Exact division keeps
    # row sums == 1 to tight tolerance (do NOT use approx reciprocal here).
    m = jnp.max(scores, axis=1, keepdims=True)
    ex = jnp.exp(scores - m)
    denom = jnp.sum(ex, axis=1, keepdims=True)
    out_ref[...] = (ex / denom).astype(out_ref.dtype)


def prepare_attention_params(w_attn, b_attn, w_v):
    """Pack the PyTorch-layout weights into ONE VMEM-friendly buffer (run once).

    w_attn: (H, 3H)  nn.Linear(3H, H).weight
    b_attn: (H,)     nn.Linear(3H, H).bias
    w_v:    (1, H)   nn.Linear(H, 1, bias=False).weight

    Layout of the returned (3H+16, H) f32 array (all offsets 8-aligned for H%8==0):
      rows [0,   2H) : Wh  (acts on the hidden part of the concat)
      rows [2H,  3H) : We  (acts on the encoder part of the concat)
      row   3H       : bias
      row   3H + 8   : v   (score projection, kept as a lane-dense row)
    """
    H = w_attn.shape[0]
    w_t = w_attn.T.astype(jnp.float32)               # (3H, H)
    packed = jnp.zeros((3 * H + 16, H), jnp.float32)
    packed = packed.at[0:3 * H, :].set(w_t)          # Wh rows then We rows
    packed = packed.at[3 * H, :].set(b_attn.astype(jnp.float32))
    packed = packed.at[3 * H + 8, :].set(w_v.reshape(H).astype(jnp.float32))
    return packed


def attention_pallas_packed(hidden, encoder_outputs, packed_params):
    """Run the kernel given the already-packed parameter buffer.

    Preferred entry point inside a decode loop: pack once, call many times.
    """
    B, S, H = encoder_outputs.shape
    assert hidden.shape == (B, 2 * H)
    assert packed_params.shape == (3 * H + 16, H)

    # Flatten (B, S, H) -> (B*S, H) so the encoder projection is one 2-D matmul.
    enc_flat = encoder_outputs.reshape(B * S, H)

    flops = (
        2 * B * (2 * H) * H      # hidden projection
        + 2 * (B * S) * H * H    # encoder projection
        + 2 * B * S * H          # score multiply + reduce
        + 4 * B * S              # softmax sub / exp-adds / div
    )
    transcendentals = B * S * H + B * S              # tanh + exp
    bytes_accessed = 4 * (
        B * 2 * H + B * S * H                        # inputs
        + (3 * H + 16) * H                           # packed params
        + B * S                                      # output
    )

    return pl.pallas_call(
        _attention_kernel,
        out_shape=jax.ShapeDtypeStruct((B, S), jnp.float32),
        in_specs=[
            pl.BlockSpec(memory_space=pltpu.MemorySpace.VMEM),  # hidden   (B, 2H)
            pl.BlockSpec(memory_space=pltpu.MemorySpace.VMEM),  # enc_flat (B*S, H)
            pl.BlockSpec(memory_space=pltpu.MemorySpace.VMEM),  # params   (3H+16, H)
        ],
        out_specs=pl.BlockSpec(memory_space=pltpu.MemorySpace.VMEM),
        cost_estimate=pl.CostEstimate(
            flops=flops,
            transcendentals=transcendentals,
            bytes_accessed=bytes_accessed,
        ),
    )(hidden, enc_flat, packed_params)


def attention_pallas(hidden, encoder_outputs, w_attn, b_attn, w_v):
    """Convenience wrapper taking raw PyTorch-layout weights."""
    packed = prepare_attention_params(w_attn, b_attn, w_v)
    return attention_pallas_packed(hidden, encoder_outputs, packed)


def attention_ref(hidden, encoder_outputs, w_attn, b_attn, w_v):
    """Pure-JAX reference matching the PyTorch forward exactly."""
    B, S, H = encoder_outputs.shape
    hid_rep = jnp.broadcast_to(hidden[:, None, :], (B, S, hidden.shape[-1]))
    cat = jnp.concatenate([hid_rep, encoder_outputs], axis=2)       # (B, S, 3H)
    energy = jnp.tanh(cat @ w_attn.T + b_attn)                      # (B, S, H)
    scores = (energy @ w_v.T)[..., 0]                               # (B, S)
    return jax.nn.softmax(scores, axis=1)


if __name__ == "__main__":
    # Small shapes consistent with the module: hidden_dim H=32, src_len S=8, batch B=2.
    B, S, H = 2, 8, 32

    key = jax.random.PRNGKey(0)
    k1, k2, k3, k4, k5 = jax.random.split(key, 5)

    # Inputs.
    hidden = jax.random.normal(k1, (B, 2 * H), dtype=jnp.float32)
    encoder_outputs = jax.random.normal(k2, (B, S, H), dtype=jnp.float32)

    # Deterministic parameter init (PyTorch nn.Linear style uniform(-1/sqrt(fan_in), ...)).
    fan_attn = 3 * H
    bound_attn = 1.0 / (fan_attn ** 0.5)
    w_attn = jax.random.uniform(k3, (H, 3 * H), jnp.float32, -bound_attn, bound_attn)
    b_attn = jax.random.uniform(k4, (H,), jnp.float32, -bound_attn, bound_attn)

    bound_v = 1.0 / (H ** 0.5)
    w_v = jax.random.uniform(k5, (1, H), jnp.float32, -bound_v, bound_v)

    out = attention_pallas(hidden, encoder_outputs, w_attn, b_attn, w_v)
    out = jax.block_until_ready(out)

    ref = attention_ref(hidden, encoder_outputs, w_attn, b_attn, w_v)
    assert out.shape == (B, S)
    assert jnp.allclose(out, ref, atol=1e-5, rtol=1e-5), "mismatch vs reference"
    assert jnp.allclose(jnp.sum(out, axis=1), 1.0, atol=1e-5), "rows must sum to 1"

    print("KERNEL_OK")
</pallas_src>

<mosaic_0001>
module attributes {stable_mosaic.version = 11 : i64} {
  func.func @_attention_kernel(%arg0: memref<2x64xf32, #tpu.memory_space<vmem>>, %arg1: memref<16x32xf32, #tpu.memory_space<vmem>>, %arg2: memref<112x32xf32, #tpu.memory_space<vmem>>, %arg3: memref<2x8xf32, #tpu.memory_space<vmem>>) attributes {dimension_semantics = [], scalar_prefetch = 0 : i64, scratch_operands = 0 : i64, tpu.core_type = #tpu.core_type<tc>} {
    %c0 = arith.constant 0 : index
    %c0_0 = arith.constant 0 : index
    %0 = vector.load %arg2[%c0, %c0_0] : memref<112x32xf32, #tpu.memory_space<vmem>>, vector<64x32xf32>
    %c64 = arith.constant 64 : index
    %c0_1 = arith.constant 0 : index
    %1 = vector.load %arg2[%c64, %c0_1] : memref<112x32xf32, #tpu.memory_space<vmem>>, vector<32x32xf32>
    %c96 = arith.constant 96 : index
    %c0_2 = arith.constant 0 : index
    %2 = vector.load %arg2[%c96, %c0_2] : memref<112x32xf32, #tpu.memory_space<vmem>>, vector<1x32xf32>
    %c104 = arith.constant 104 : index
    %c0_3 = arith.constant 0 : index
    %3 = vector.load %arg2[%c104, %c0_3] : memref<112x32xf32, #tpu.memory_space<vmem>>, vector<1x32xf32>
    %c0_4 = arith.constant 0 : index
    %c0_5 = arith.constant 0 : index
    %4 = vector.load %arg0[%c0_4, %c0_5] : memref<2x64xf32, #tpu.memory_space<vmem>>, vector<2x64xf32>
    %cst = arith.constant dense<0.000000e+00> : vector<2x32xf32>
    %5 = tpu.matmul %4, %0, %cst {dimension_numbers = #tpu.dot_dimension_numbers<[1], [0], [0], [1], [0, 0, 1, 1], [], []>, precision = #tpu.contract_precision<fp32>} : vector<2x64xf32>, vector<64x32xf32>, vector<2x32xf32> -> vector<2x32xf32>
    %6 = vector.broadcast %2 : vector<1x32xf32> to vector<2x32xf32>
    %7 = arith.addf %5, %6 : vector<2x32xf32>
    %c0_6 = arith.constant 0 : index
    %c0_7 = arith.constant 0 : index
    %8 = vector.load %arg1[%c0_6, %c0_7] : memref<16x32xf32, #tpu.memory_space<vmem>>, vector<16x32xf32>
    %cst_8 = arith.constant dense<0.000000e+00> : vector<16x32xf32>
    %9 = tpu.matmul %8, %1, %cst_8 {dimension_numbers = #tpu.dot_dimension_numbers<[1], [0], [0], [1], [0, 0, 1, 1], [], []>, precision = #tpu.contract_precision<fp32>} : vector<16x32xf32>, vector<32x32xf32>, vector<16x32xf32> -> vector<16x32xf32>
    %10 = vector.shape_cast %7 : vector<2x32xf32> to vector<2x1x32xf32>
    %11 = vector.shape_cast %10 : vector<2x1x32xf32> to vector<2x1x32xf32>
    %12 = vector.broadcast %11 : vector<2x1x32xf32> to vector<2x8x32xf32>
    %13 = vector.shape_cast %12 : vector<2x8x32xf32> to vector<16x32xf32>
    %14 = arith.addf %9, %13 : vector<16x32xf32>
    %15 = math.tanh %14 : vector<16x32xf32>
    %16 = vector.broadcast %3 : vector<1x32xf32> to vector<16x32xf32>
    %17 = arith.mulf %15, %16 : vector<16x32xf32>
    %18 = vector.shape_cast %17 : vector<16x32xf32> to vector<2x8x32xf32>
    %cst_9 = arith.constant dense<0.000000e+00> : vector<2x8xf32>
    %19 = vector.multi_reduction <add>, %18, %cst_9 [2] : vector<2x8x32xf32> to vector<2x8xf32>
    %cst_10 = arith.constant dense<0xFF800000> : vector<2xf32>
    %20 = vector.multi_reduction <maximumf>, %19, %cst_10 [1] : vector<2x8xf32> to vector<2xf32>
    %21 = vector.shape_cast %20 : vector<2xf32> to vector<2x1xf32>
    %22 = vector.broadcast %21 : vector<2x1xf32> to vector<2x8xf32>
    %23 = arith.subf %19, %22 : vector<2x8xf32>
    %24 = math.exp %23 : vector<2x8xf32>
    %cst_11 = arith.constant dense<0.000000e+00> : vector<2xf32>
    %25 = vector.multi_reduction <add>, %24, %cst_11 [1] : vector<2x8xf32> to vector<2xf32>
    %26 = vector.shape_cast %25 : vector<2xf32> to vector<2x1xf32>
    %27 = vector.broadcast %26 : vector<2x1xf32> to vector<2x8xf32>
    %28 = arith.divf %24, %27 : vector<2x8xf32>
    %c0_12 = arith.constant 0 : index
    %c0_13 = arith.constant 0 : index
    %29 = vector.load %arg3[%c0_12, %c0_13] : memref<2x8xf32, #tpu.memory_space<vmem>>, vector<2x8xf32>
    tpu.vector_store %arg3[%c0_12, %c0_13], %28 {strides = array<i32>} : memref<2x8xf32, #tpu.memory_space<vmem>>, vector<2x8xf32>,
    return
  }
}

</mosaic_0001>

<llo_original>
// kernel: tpu_custom_call.1
$region0: #{tpu_custom_call.1}
  #allocation0 [shape = 'u32[]', space=smem, size = 0x4, offset = 0x4, fixed_abs, tag = 'smem constant byte address 0x4 - core index']
  #allocation1 [shape = 'u32[144,128]{1,0:T(1,128)}', space=vmem, size = 0x12000, scoped, tag = 'internal scratch']
  %s0 = inlined_call_operand.vmem [shape: f32[2,64], index: 0, kind: input, shape index: {}]
  %s1 = inlined_call_operand.vmem [shape: f32[16,32], index: 1, kind: input, shape index: {}]
  %s2 = inlined_call_operand.vmem [shape: f32[112,32], index: 2, kind: input, shape index: {}]
  %s3 = inlined_call_operand.hbm [shape: f32[2,8], index: 3, kind: output, shape index: {}]
  %s4 = sld [smem:[#allocation0]]
  $region22: #{tpu_custom_call.1} parent=0
    _
  %s6 = ssub.s32 1, %s4
  %s7 = scalar_select 0, %s6, %s4
  $region1: #{tpu_custom_call.1} parent=0
    #allocation2 [shape = 'u8[1024]{0}', space=vmem, size = 0x400, scoped, tag = 'output window, operand 0, single buffered']
    #allocation3 [shape = 's32[1]{0}', space=sflag, size = 0x4, scoped, tag = 'scoped memory for tpu_custom_call.1']
    %8 = vsyncpa [#allocation3], 0
    // Predicated region
    $region2: #{tpu_custom_call.1} parent=1 // pred_check
      _
    $region3: #{tpu_custom_call.1} parent=1 // pred_check_branch
      %10 = sbr.rel (0) target = $region5
    $region4: #{tpu_custom_call.1} parent=1 // pred_region
      _
    $region5: #{tpu_custom_call.1} parent=1 // pred_fallthru
      _
    // Predicated region
    $region6: #{tpu_custom_call.1} parent=1 // pred_check
      _
    $region7: #{tpu_custom_call.1} parent=1 // pred_check_branch
      %12 = sbr.rel (0) target = $region9
    $region8: #{tpu_custom_call.1} parent=1 // pred_region
      _
    $region9: #{tpu_custom_call.1} parent=1 // pred_fallthru
      _
    // Predicated region
    $region10: #{tpu_custom_call.1} parent=1 // pred_check
      _
    $region11: #{tpu_custom_call.1} parent=1 // pred_check_branch
      %14 = sbr.rel (0) target = $region13
    $region12: #{tpu_custom_call.1} parent=1 // pred_region
      _
    $region13: #{tpu_custom_call.1} parent=1 // pred_fallthru
      _
    %v15 = vld [vmem:[%s2] sm:$0xff]
    %v16 = vld [vmem:[%s2 + $0x8] sm:$0xff]
    %v17 = vld [vmem:[%s2 + $0x10] sm:$0xff]
    %v18 = vld [vmem:[%s2 + $0x18] sm:$0xff]
    %v19 = vld [vmem:[%s2 + $0x20] sm:$0xff]
    %v20 = vld [vmem:[%s2 + $0x28] sm:$0xff]
    %v21 = vld [vmem:[%s2 + $0x30] sm:$0xff]
    %v22 = vld [vmem:[%s2 + $0x38] sm:$0xff]
    %v23 = vld [vmem:[%s2 + $0x40] sm:$0xff]
    %v24 = vld [vmem:[%s2 + $0x48] sm:$0xff]
    %v25 = vld [vmem:[%s2 + $0x50] sm:$0xff]
    %v26 = vld [vmem:[%s2 + $0x58] sm:$0xff]
    %v27 = vld [vmem:[%s2 + $0x60] sm:$0x1]
    %v28 = vld [vmem:[%s2 + $0x68] sm:$0x1]
    %v29 = vld [vmem:[%s0] sm:$0x3]
    %v30 = vlaneseq
    %v31 = vshrl.u32 %v30, 7
    %v32 = vsub.s32 0, %v31
    %v33 = vrot.slane %v27, %v32
    %vm34 = vcmask 523264
    %v36 = vsel %vm34, %v29, 0
    %38 = vmatprep.subr.mxu0 0.0
    %v39 = vand.u32 %v15, 4294901760
    %40 = vmatpush1.msra.mxu0 %v39
    %41 = vmatprep.subr.mxu0 0.0
    %v42 = vand.u32 %v16, 4294901760
    %43 = vmatpush1.msra.mxu0 %v42
    %44 = vmatprep.subr.mxu0 0.0
    %v45 = vand.u32 %v17, 4294901760
    %46 = vmatpush1.msra.mxu0 %v45
    %47 = vmatprep.subr.mxu0 0.0
    %v48 = vand.u32 %v18, 4294901760
    %49 = vmatpush1.msra.mxu0 %v48
    %50 = vmatprep.subr.mxu0 0.0
    %v51 = vand.u32 %v19, 4294901760
    %52 = vmatpush1.msra.mxu0 %v51
    %53 = vmatprep.subr.mxu0 0.0
    %v54 = vand.u32 %v20, 4294901760
    %55 = vmatpush1.msra.mxu0 %v54
    %56 = vmatprep.subr.mxu0 0.0
    %v57 = vand.u32 %v21, 4294901760
    %58 = vmatpush1.msra.mxu0 %v57
    %59 = vmatprep.subr.mxu0 0.0
    %v60 = vand.u32 %v22, 4294901760
    %61 = vmatpush1.msra.mxu0 %v60
    %62 = vmatprep.subr.mxu0 0.0
    %63 = vmatpush1.msra.mxu0 0.0
    %64 = vmatprep.subr.mxu0 0.0
    %65 = vmatpush1.msra.mxu0 0.0
    %66 = vmatprep.subr.mxu0 0.0
    %67 = vmatpush1.msra.mxu0 0.0
    %68 = vmatprep.subr.mxu0 0.0
    %69 = vmatpush1.msra.mxu0 0.0
    %70 = vmatprep.subr.mxu0 0.0
    %71 = vmatpush1.msra.mxu0 0.0
    %72 = vmatprep.subr.mxu0 0.0
    %73 = vmatpush1.msra.mxu0 0.0
    %74 = vmatprep.subr.mxu0 0.0
    %75 = vmatpush1.msra.mxu0 0.0
    %76 = vmatprep.subr.mxu0 0.0
    %77 = vmatpush1.msra.mxu0 0.0
    %78 = vmatprep.subr.mxu0 0.0
    %79 = vmatpush1.msra.mxu0 0.0
    %80 = vmatprep.subr.mxu0 0.0
    %81 = vmatpush1.msra.mxu0 0.0
    %82 = vmatprep.subr.mxu0 0.0
    %83 = vmatpush1.msra.mxu0 0.0
    %84 = vmatprep.subr.mxu0 0.0
    %85 = vmatpush1.msra.mxu0 0.0
    %86 = vmatprep.subr.mxu0 0.0
    %87 = vmatpush1.msra.mxu0 0.0
    %88 = vmatprep.subr.mxu0 0.0
    %89 = vmatpush1.msra.mxu0 0.0
    %90 = vmatprep.subr.mxu0 0.0
    %91 = vmatpush1.msra.mxu0 0.0
    %92 = vmatprep.subr.mxu0 0.0
    %93 = vmatpush1.msra.mxu0 0.0
    %94 = vmatprep.subr.mxu0 0.0
    %95 = vmatpush1.msra.mxu0 0.0
    %96 = vmatprep.subr.mxu0 0.0
    %97 = vmatpush1.msra.mxu0 0.0
    %98 = vmatprep.subr.mxu0 0.0
    %99 = vmatpush1.msra.mxu0 0.0
    %100 = vmatprep.subr.mxu0 0.0
    %101 = vmatpush1.msra.mxu0 0.0
    %102 = vmatprep.subr.mxu0 0.0
    %103 = vmatpush1.msra.mxu0 0.0
    %104 = vmatprep.subr.mxu0 0.0
    %105 = vmatpush1.msra.mxu0 0.0
    %106 = vmatprep.subr.mxu0 0.0
    %107 = vmatpush1.msra.mxu0 0.0
    %108 = vmatprep.subr.mxu0 0.0
    %109 = vmatpush1.msra.mxu0 0.0
    %110 = vmatprep.mubr.f32.mxu0 0.0
    %v111 = vand.u32 %v36, 4294901760
    %v112 = vsub.f32 %v36, %v111
    %v113 = vand.u32 %v112, 4294901760
    %v114 = vsub.f32 %v112, %v113
    %v115 = vand.u32 %v114, 4294901760
    %116 = vmatmul.mubr.f32.gmra.mrb[0].mxu0 %v115
    %v117 = vpop.f32.mrb[0].mxu0
    %v118 = vadd.f32 %v33, %v117
    %v119 = vpop.f32.mrb[0].mxu0
    %120 = vdwg.mxu0
    %121 = vmatprep.subr.mxu0 0.0
    %v122 = vand.u32 %v15, 4294901760
    %v123 = vsub.f32 %v15, %v122
    %v124 = vand.u32 %v123, 4294901760
    %v125 = vsub.f32 %v123, %v124
    %v126 = vand.u32 %v125, 4294901760
    %127 = vmatpush1.msra.mxu0 %v126
    %128 = vmatprep.subr.mxu0 0.0
    %v129 = vand.u32 %v16, 4294901760
    %v130 = vsub.f32 %v16, %v129
    %v131 = vand.u32 %v130, 4294901760
    %v132 = vsub.f32 %v130, %v131
    %v133 = vand.u32 %v132, 4294901760
    %134 = vmatpush1.msra.mxu0 %v133
    %135 = vmatprep.subr.mxu0 0.0
    %v136 = vand.u32 %v17, 4294901760
    %v137 = vsub.f32 %v17, %v136
    %v138 = vand.u32 %v137, 4294901760
    %v139 = vsub.f32 %v137, %v138
    %v140 = vand.u32 %v139, 4294901760
    %141 = vmatpush1.msra.mxu0 %v140
    %142 = vmatprep.subr.mxu0 0.0
    %v143 = vand.u32 %v18, 4294901760
    %v144 = vsub.f32 %v18, %v143
    %v145 = vand.u32 %v144, 4294901760
    %v146 = vsub.f32 %v144, %v145
    %v147 = vand.u32 %v146, 4294901760
    %148 = vmatpush1.msra.mxu0 %v147
    %149 = vmatprep.subr.mxu0 0.0
    %v150 = vand.u32 %v19, 4294901760
    %v151 = vsub.f32 %v19, %v150
    %v152 = vand.u32 %v151, 4294901760
    %v153 = vsub.f32 %v151, %v152
    %v154 = vand.u32 %v153, 4294901760
    %155 = vmatpush1.msra.mxu0 %v154
    %156 = vmatprep.subr.mxu0 0.0
    %v157 = vand.u32 %v20, 4294901760
    %v158 = vsub.f32 %v20, %v157
    %v159 = vand.u32 %v158, 4294901760
    %v160 = vsub.f32 %v158, %v159
    %v161 = vand.u32 %v160, 4294901760
    %162 = vmatpush1.msra.mxu0 %v161
    %163 = vmatprep.subr.mxu0 0.0
    %v164 = vand.u32 %v21, 4294901760
    %v165 = vsub.f32 %v21, %v164
    %v166 = vand.u32 %v165, 4294901760
    %v167 = vsub.f32 %v165, %v166
    %v168 = vand.u32 %v167, 4294901760
    %169 = vmatpush1.msra.mxu0 %v168
    %170 = vmatprep.subr.mxu0 0.0
    %v171 = vand.u32 %v22, 4294901760
    %v172 = vsub.f32 %v22, %v171
    %v173 = vand.u32 %v172, 4294901760
    %v174 = vsub.f32 %v172, %v173
    %v175 = vand.u32 %v174, 4294901760
    %176 = vmatpush1.msra.mxu0 %v175
    %177 = vmatprep.subr.mxu0 0.0
    %178 = vmatpush1.msra.mxu0 0.0
    %179 = vmatprep.subr.mxu0 0.0
    %180 = vmatpush1.msra.mxu0 0.0
    %181 = vmatprep.subr.mxu0 0.0
    %182 = vmatpush1.msra.mxu0 0.0
    %183 = vmatprep.subr.mxu0 0.0
    %184 = vmatpush1.msra.mxu0 0.0
    %185 = vmatprep.subr.mxu0 0.0
    %186 = vmatpush1.msra.mxu0 0.0
    %187 = vmatprep.subr.mxu0 0.0
    %188 = vmatpush1.msra.mxu0 0.0
    %189 = vmatprep.subr.mxu0 0.0
    %190 = vmatpush1.msra.mxu0 0.0
    %191 = vmatprep.subr.mxu0 0.0
    %192 = vmatpush1.msra.mxu0 0.0
    %193 = vmatprep.subr.mxu0 0.0
    %194 = vmatpush1.msra.mxu0 0.0
    %195 = vmatprep.subr.mxu0 0.0
    %196 = vmatpush1.msra.mxu0 0.0
    %197 = vmatprep.subr.mxu0 0.0
    %198 = vmatpush1.msra.mxu0 0.0
    %199 = vmatprep.subr.mxu0 0.0
    %200 = vmatpush1.msra.mxu0 0.0
    %201 = vmatprep.subr.mxu0 0.0
    %202 = vmatpush1.msra.mxu0 0.0
    %203 = vmatprep.subr.mxu0 0.0
    %204 = vmatpush1.msra.mxu0 0.0
    %205 = vmatprep.subr.mxu0 0.0
    %206 = vmatpush1.msra.mxu0 0.0
    %207 = vmatprep.subr.mxu0 0.0
    %208 = vmatpush1.msra.mxu0 0.0
    %209 = vmatprep.subr.mxu0 0.0
    %210 = vmatpush1.msra.mxu0 0.0
    %211 = vmatprep.subr.mxu0 0.0
    %212 = vmatpush1.msra.mxu0 0.0
    %213 = vmatprep.subr.mxu0 0.0
    %214 = vmatpush1.msra.mxu0 0.0
    %215 = vmatprep.subr.mxu0 0.0
    %216 = vmatpush1.msra.mxu0 0.0
    %217 = vmatprep.subr.mxu0 0.0
    %218 = vmatpush1.msra.mxu0 0.0
    %219 = vmatprep.subr.mxu0 0.0
    %220 = vmatpush1.msra.mxu0 0.0
    %221 = vmatprep.subr.mxu0 0.0
    %222 = vmatpush1.msra.mxu0 0.0
    %223 = vmatprep.subr.mxu0 0.0
    %224 = vmatpush1.msra.mxu0 0.0
    %225 = vmatprep.mubr.f32.mxu0 0.0
    %v226 = vand.u32 %v36, 4294901760
    %227 = vmatmul.mubr.f32.gmra.mrb[0].mxu0 %v226
    %v228 = vpop.f32.mrb[0].mxu0
    %v229 = vadd.f32 %v118, %v228
    %v230 = vpop.f32.mrb[0].mxu0
    %231 = vdwg.mxu0
    %232 = vmatprep.subr.mxu0 0.0
    %v233 = vand.u32 %v15, 4294901760
    %v234 = vsub.f32 %v15, %v233
    %235 = vmatpush1.msra.mxu0 %v234
    %236 = vmatprep.subr.mxu0 0.0
    %v237 = vand.u32 %v16, 4294901760
    %v238 = vsub.f32 %v16, %v237
    %239 = vmatpush1.msra.mxu0 %v238
    %240 = vmatprep.subr.mxu0 0.0
    %v241 = vand.u32 %v17, 4294901760
    %v242 = vsub.f32 %v17, %v241
    %243 = vmatpush1.msra.mxu0 %v242
    %244 = vmatprep.subr.mxu0 0.0
    %v245 = vand.u32 %v18, 4294901760
    %v246 = vsub.f32 %v18, %v245
    %247 = vmatpush1.msra.mxu0 %v246
    %248 = vmatprep.subr.mxu0 0.0
    %v249 = vand.u32 %v19, 4294901760
    %v250 = vsub.f32 %v19, %v249
    %251 = vmatpush1.msra.mxu0 %v250
    %252 = vmatprep.subr.mxu0 0.0
    %v253 = vand.u32 %v20, 4294901760
    %v254 = vsub.f32 %v20, %v253
    %255 = vmatpush1.msra.mxu0 %v254
    %256 = vmatprep.subr.mxu0 0.0
    %v257 = vand.u32 %v21, 4294901760
    %v258 = vsub.f32 %v21, %v257
    %259 = vmatpush1.msra.mxu0 %v258
    %260 = vmatprep.subr.mxu0 0.0
    %v261 = vand.u32 %v22, 4294901760
    %v262 = vsub.f32 %v22, %v261
    %263 = vmatpush1.msra.mxu0 %v262
    %264 = vmatprep.subr.mxu0 0.0
    %265 = vmatpush1.msra.mxu0 0.0
    %266 = vmatprep.subr.mxu0 0.0
    %267 = vmatpush1.msra.mxu0 0.0
    %268 = vmatprep.subr.mxu0 0.0
    %269 = vmatpush1.msra.mxu0 0.0
    %270 = vmatprep.subr.mxu0 0.0
    %271 = vmatpush1.msra.mxu0 0.0
    %272 = vmatprep.subr.mxu0 0.0
    %273 = vmatpush1.msra.mxu0 0.0
    %274 = vmatprep.subr.mxu0 0.0
    %275 = vmatpush1.msra.mxu0 0.0
    %276 = vmatprep.subr.mxu0 0.0
    %277 = vmatpush1.msra.mxu0 0.0
    %278 = vmatprep.subr.mxu0 0.0
    %279 = vmatpush1.msra.mxu0 0.0
    %280 = vmatprep.subr.mxu0 0.0
    %281 = vmatpush1.msra.mxu0 0.0
    %282 = vmatprep.subr.mxu0 0.0
    %283 = vmatpush1.msra.mxu0 0.0
    %284 = vmatprep.subr.mxu0 0.0
    %285 = vmatpush1.msra.mxu0 0.0
    %286 = vmatprep.subr.mxu0 0.0
    %287 = vmatpush1.msra.mxu0 0.0
    %288 = vmatprep.subr.mxu0 0.0
    %289 = vmatpush1.msra.mxu0 0.0
    %290 = vmatprep.subr.mxu0 0.0
    %291 = vmatpush1.msra.mxu0 0.0
    %292 = vmatprep.subr.mxu0 0.0
    %293 = vmatpush1.msra.mxu0 0.0
    %294 = vmatprep.subr.mxu0 0.0
    %295 = vmatpush1.msra.mxu0 0.0
    %296 = vmatprep.subr.mxu0 0.0
    %297 = vmatpush1.msra.mxu0 0.0
    %298 = vmatprep.subr.mxu0 0.0
    %299 = vmatpush1.msra.mxu0 0.0
    %300 = vmatprep.subr.mxu0 0.0
    %301 = vmatpush1.msra.mxu0 0.0
    %302 = vmatprep.subr.mxu0 0.0
    %303 = vmatpush1.msra.mxu0 0.0
    %304 = vmatprep.subr.mxu0 0.0
    %305 = vmatpush1.msra.mxu0 0.0
    %306 = vmatprep.subr.mxu0 0.0
    %307 = vmatpush1.msra.mxu0 0.0
    %308 = vmatprep.subr.mxu0 0.0
    %309 = vmatpush1.msra.mxu0 0.0
    %310 = vmatprep.subr.mxu0 0.0
    %311 = vmatpush1.msra.mxu0 0.0
    %312 = vmatprep.mubr.f32.mxu0 0.0
    %v313 = vand.u32 %v36, 4294901760
    %v314 = vsub.f32 %v36, %v313
    %315 = vmatmul.mubr.f32.gmra.mrb[0].mxu0 %v314
    %v316 = vpop.f32.mrb[0].mxu0
    %v317 = vadd.f32 %v229, %v316
    %v318 = vpop.f32.mrb[0].mxu0
    %319 = vdwg.mxu0
    %320 = vmatprep.subr.mxu0 0.0
    %v321 = vand.u32 %v15, 4294901760
    %322 = vmatpush1.msra.mxu0 %v321
    %323 = vmatprep.subr.mxu0 0.0
    %v324 = vand.u32 %v16, 4294901760
    %325 = vmatpush1.msra.mxu0 %v324
    %326 = vmatprep.subr.mxu0 0.0
    %v327 = vand.u32 %v17, 4294901760
    %328 = vmatpush1.msra.mxu0 %v327
    %329 = vmatprep.subr.mxu0 0.0
    %v330 = vand.u32 %v18, 4294901760
    %331 = vmatpush1.msra.mxu0 %v330
    %332 = vmatprep.subr.mxu0 0.0
    %v333 = vand.u32 %v19, 4294901760
    %334 = vmatpush1.msra.mxu0 %v333
    %335 = vmatprep.subr.mxu0 0.0
    %v336 = vand.u32 %v20, 4294901760
    %337 = vmatpush1.msra.mxu0 %v336
    %338 = vmatprep.subr.mxu0 0.0
    %v339 = vand.u32 %v21, 4294901760
    %340 = vmatpush1.msra.mxu0 %v339
    %341 = vmatprep.subr.mxu0 0.0
    %v342 = vand.u32 %v22, 4294901760
    %343 = vmatpush1.msra.mxu0 %v342
    %344 = vmatprep.subr.mxu0 0.0
    %345 = vmatpush1.msra.mxu0 0.0
    %346 = vmatprep.subr.mxu0 0.0
    %347 = vmatpush1.msra.mxu0 0.0
    %348 = vmatprep.subr.mxu0 0.0
    %349 = vmatpush1.msra.mxu0 0.0
    %350 = vmatprep.subr.mxu0 0.0
    %351 = vmatpush1.msra.mxu0 0.0
    %352 = vmatprep.subr.mxu0 0.0
    %353 = vmatpush1.msra.mxu0 0.0
    %354 = vmatprep.subr.mxu0 0.0
    %355 = vmatpush1.msra.mxu0 0.0
    %356 = vmatprep.subr.mxu0 0.0
    %357 = vmatpush1.msra.mxu0 0.0
    %358 = vmatprep.subr.mxu0 0.0
    %359 = vmatpush1.msra.mxu0 0.0
    %360 = vmatprep.subr.mxu0 0.0
    %361 = vmatpush1.msra.mxu0 0.0
    %362 = vmatprep.subr.mxu0 0.0
    %363 = vmatpush1.msra.mxu0 0.0
    %364 = vmatprep.subr.mxu0 0.0
    %365 = vmatpush1.msra.mxu0 0.0
    %366 = vmatprep.subr.mxu0 0.0
    %367 = vmatpush1.msra.mxu0 0.0
    %368 = vmatprep.subr.mxu0 0.0
    %369 = vmatpush1.msra.mxu0 0.0
    %370 = vmatprep.subr.mxu0 0.0
    %371 = vmatpush1.msra.mxu0 0.0
    %372 = vmatprep.subr.mxu0 0.0
    %373 = vmatpush1.msra.mxu0 0.0
    %374 = vmatprep.subr.mxu0 0.0
    %375 = vmatpush1.msra.mxu0 0.0
    %376 = vmatprep.subr.mxu0 0.0
    %377 = vmatpush1.msra.mxu0 0.0
    %378 = vmatprep.subr.mxu0 0.0
    %379 = vmatpush1.msra.mxu0 0.0
    %380 = vmatprep.subr.mxu0 0.0
    %381 = vmatpush1.msra.mxu0 0.0
    %382 = vmatprep.subr.mxu0 0.0
    %383 = vmatpush1.msra.mxu0 0.0
    %384 = vmatprep.subr.mxu0 0.0
    %385 = vmatpush1.msra.mxu0 0.0
    %386 = vmatprep.subr.mxu0 0.0
    %387 = vmatpush1.msra.mxu0 0.0
    %388 = vmatprep.subr.mxu0 0.0
    %389 = vmatpush1.msra.mxu0 0.0
    %390 = vmatprep.subr.mxu0 0.0
    %391 = vmatpush1.msra.mxu0 0.0
    %392 = vmatprep.mubr.f32.mxu0 0.0
    %v393 = vand.u32 %v36, 4294901760
    %v394 = vsub.f32 %v36, %v393
    %v395 = vand.u32 %v394, 4294901760
    %396 = vmatmul.mubr.f32.gmra.mrb[0].mxu0 %v395
    %v397 = vpop.f32.mrb[0].mxu0
    %v398 = vadd.f32 %v317, %v397
    %v399 = vpop.f32.mrb[0].mxu0
    %400 = vdwg.mxu0
    %401 = vmatprep.subr.mxu0 0.0
    %v402 = vand.u32 %v15, 4294901760
    %v403 = vsub.f32 %v15, %v402
    %v404 = vand.u32 %v403, 4294901760
    %405 = vmatpush1.msra.mxu0 %v404
    %406 = vmatprep.subr.mxu0 0.0
    %v407 = vand.u32 %v16, 4294901760
    %v408 = vsub.f32 %v16, %v407
    %v409 = vand.u32 %v408, 4294901760
    %410 = vmatpush1.msra.mxu0 %v409
    %411 = vmatprep.subr.mxu0 0.0
    %v412 = vand.u32 %v17, 4294901760
    %v413 = vsub.f32 %v17, %v412
    %v414 = vand.u32 %v413, 4294901760
    %415 = vmatpush1.msra.mxu0 %v414
    %416 = vmatprep.subr.mxu0 0.0
    %v417 = vand.u32 %v18, 4294901760
    %v418 = vsub.f32 %v18, %v417
    %v419 = vand.u32 %v418, 4294901760
    %420 = vmatpush1.msra.mxu0 %v419
    %421 = vmatprep.subr.mxu0 0.0
    %v422 = vand.u32 %v19, 4294901760
    %v423 = vsub.f32 %v19, %v422
    %v424 = vand.u32 %v423, 4294901760
    %425 = vmatpush1.msra.mxu0 %v424
    %426 = vmatprep.subr.mxu0 0.0
    %v427 = vand.u32 %v20, 4294901760
    %v428 = vsub.f32 %v20, %v427
    %v429 = vand.u32 %v428, 4294901760
    %430 = vmatpush1.msra.mxu0 %v429
    %431 = vmatprep.subr.mxu0 0.0
    %v432 = vand.u32 %v21, 4294901760
    %v433 = vsub.f32 %v21, %v432
    %v434 = vand.u32 %v433, 4294901760
    %435 = vmatpush1.msra.mxu0 %v434
    %436 = vmatprep.subr.mxu0 0.0
    %v437 = vand.u32 %v22, 4294901760
    %v438 = vsub.f32 %v22, %v437
    %v439 = vand.u32 %v438, 4294901760
    %440 = vmatpush1.msra.mxu0 %v439
    %441 = vmatprep.subr.mxu0 0.0
    %442 = vmatpush1.msra.mxu0 0.0
    %443 = vmatprep.subr.mxu0 0.0
    %444 = vmatpush1.msra.mxu0 0.0
    %445 = vmatprep.subr.mxu0 0.0
    %446 = vmatpush1.msra.mxu0 0.0
    %447 = vmatprep.subr.mxu0 0.0
    %448 = vmatpush1.msra.mxu0 0.0
    %449 = vmatprep.subr.mxu0 0.0
    %450 = vmatpush1.msra.mxu0 0.0
    %451 = vmatprep.subr.mxu0 0.0
    %452 = vmatpush1.msra.mxu0 0.0
    %453 = vmatprep.subr.mxu0 0.0
    %454 = vmatpush1.msra.mxu0 0.0
    %455 = vmatprep.subr.mxu0 0.0
    %456 = vmatpush1.msra.mxu0 0.0
    %457 = vmatprep.subr.mxu0 0.0
    %458 = vmatpush1.msra.mxu0 0.0
    %459 = vmatprep.subr.mxu0 0.0
    %460 = vmatpush1.msra.mxu0 0.0
    %461 = vmatprep.subr.mxu0 0.0
    %462 = vmatpush1.msra.mxu0 0.0
    %463 = vmatprep.subr.mxu0 0.0
    %464 = vmatpush1.msra.mxu0 0.0
    %465 = vmatprep.subr.mxu0 0.0
    %466 = vmatpush1.msra.mxu0 0.0
    %467 = vmatprep.subr.mxu0 0.0
    %468 = vmatpush1.msra.mxu0 0.0
    %469 = vmatprep.subr.mxu0 0.0
    %470 = vmatpush1.msra.mxu0 0.0
    %471 = vmatprep.subr.mxu0 0.0
    %472 = vmatpush1.msra.mxu0 0.0
    %473 = vmatprep.subr.mxu0 0.0
    %474 = vmatpush1.msra.mxu0 0.0
    %475 = vmatprep.subr.mxu0 0.0
    %476 = vmatpush1.msra.mxu0 0.0
    %477 = vmatprep.subr.mxu0 0.0
    %478 = vmatpush1.msra.mxu0 0.0
    %479 = vmatprep.subr.mxu0 0.0
    %480 = vmatpush1.msra.mxu0 0.0
    %481 = vmatprep.subr.mxu0 0.0
    %482 = vmatpush1.msra.mxu0 0.0
    %483 = vmatprep.subr.mxu0 0.0
    %484 = vmatpush1.msra.mxu0 0.0
    %485 = vmatprep.subr.mxu0 0.0
    %486 = vmatpush1.msra.mxu0 0.0
    %487 = vmatprep.subr.mxu0 0.0
    %488 = vmatpush1.msra.mxu0 0.0
    %489 = vmatprep.mubr.f32.mxu0 0.0
    %v490 = vand.u32 %v36, 4294901760
    %491 = vmatmul.mubr.f32.gmra.mrb[0].mxu0 %v490
    %v492 = vpop.f32.mrb[0].mxu0
    %v493 = vadd.f32 %v398, %v492
    %v494 = vpop.f32.mrb[0].mxu0
    %495 = vdwg.mxu0
    %496 = vmatprep.subr.mxu0 0.0
    %v497 = vand.u32 %v15, 4294901760
    %498 = vmatpush1.msra.mxu0 %v497
    %499 = vmatprep.subr.mxu0 0.0
    %v500 = vand.u32 %v16, 4294901760
    %501 = vmatpush1.msra.mxu0 %v500
    %502 = vmatprep.subr.mxu0 0.0
    %v503 = vand.u32 %v17, 4294901760
    %504 = vmatpush1.msra.mxu0 %v503
    %505 = vmatprep.subr.mxu0 0.0
    %v506 = vand.u32 %v18, 4294901760
    %507 = vmatpush1.msra.mxu0 %v506
    %508 = vmatprep.subr.mxu0 0.0
    %v509 = vand.u32 %v19, 4294901760
    %510 = vmatpush1.msra.mxu0 %v509
    %511 = vmatprep.subr.mxu0 0.0
    %v512 = vand.u32 %v20, 4294901760
    %513 = vmatpush1.msra.mxu0 %v512
    %514 = vmatprep.subr.mxu0 0.0
    %v515 = vand.u32 %v21, 4294901760
    %516 = vmatpush1.msra.mxu0 %v515
    %517 = vmatprep.subr.mxu0 0.0
    %v518 = vand.u32 %v22, 4294901760
    %519 = vmatpush1.msra.mxu0 %v518
    %520 = vmatprep.subr.mxu0 0.0
    %521 = vmatpush1.msra.mxu0 0.0
    %522 = vmatprep.subr.mxu0 0.0
    %523 = vmatpush1.msra.mxu0 0.0
    %524 = vmatprep.subr.mxu0 0.0
    %525 = vmatpush1.msra.mxu0 0.0
    %526 = vmatprep.subr.mxu0 0.0
    %527 = vmatpush1.msra.mxu0 0.0
    %528 = vmatprep.subr.mxu0 0.0
    %529 = vmatpush1.msra.mxu0 0.0
    %530 = vmatprep.subr.mxu0 0.0
    %531 = vmatpush1.msra.mxu0 0.0
    %532 = vmatprep.subr.mxu0 0.0
    %533 = vmatpush1.msra.mxu0 0.0
    %534 = vmatprep.subr.mxu0 0.0
    %535 = vmatpush1.msra.mxu0 0.0
    %536 = vmatprep.subr.mxu0 0.0
    %537 = vmatpush1.msra.mxu0 0.0
    %538 = vmatprep.subr.mxu0 0.0
    %539 = vmatpush1.msra.mxu0 0.0
    %540 = vmatprep.subr.mxu0 0.0
    %541 = vmatpush1.msra.mxu0 0.0
    %542 = vmatprep.subr.mxu0 0.0
    %543 = vmatpush1.msra.mxu0 0.0
    %544 = vmatprep.subr.mxu0 0.0
    %545 = vmatpush1.msra.mxu0 0.0
    %546 = vmatprep.subr.mxu0 0.0
    %547 = vmatpush1.msra.mxu0 0.0
    %548 = vmatprep.subr.mxu0 0.0
    %549 = vmatpush1.msra.mxu0 0.0
    %550 = vmatprep.subr.mxu0 0.0
    %551 = vmatpush1.msra.mxu0 0.0
    %552 = vmatprep.subr.mxu0 0.0
    %553 = vmatpush1.msra.mxu0 0.0
    %554 = vmatprep.subr.mxu0 0.0
    %555 = vmatpush1.msra.mxu0 0.0
    %556 = vmatprep.subr.mxu0 0.0
    %557 = vmatpush1.msra.mxu0 0.0
    %558 = vmatprep.subr.mxu0 0.0
    %559 = vmatpush1.msra.mxu0 0.0
    %560 = vmatprep.subr.mxu0 0.0
    %561 = vmatpush1.msra.mxu0 0.0
    %562 = vmatprep.subr.mxu0 0.0
    %563 = vmatpush1.msra.mxu0 0.0
    %564 = vmatprep.subr.mxu0 0.0
    %565 = vmatpush1.msra.mxu0 0.0
    %566 = vmatprep.subr.mxu0 0.0
    %567 = vmatpush1.msra.mxu0 0.0
    %568 = vmatprep.mubr.f32.mxu0 0.0
    %v569 = vand.u32 %v36, 4294901760
    %570 = vmatmul.mubr.f32.gmra.mrb[0].mxu0 %v569
    %v571 = vpop.f32.mrb[0].mxu0
    %v572 = vadd.f32 %v493, %v571
    %v573 = vpop.f32.mrb[0].mxu0
    %574 = vdwg.mxu0
    %v575 = vld [vmem:[%s1] sm:$0xff]
    %v576 = vld [vmem:[%s1 + $0x8] sm:$0xff]
    %v579 = vunpack.c.l.s4 1966171168
    %v580 = vunpack.c.0.s8 %v579
    %v581 = vlaneseq
    %v582 = vshrl.u32 %v581, 7
    %v583 = vsub.s32 %v580, %v582
    %v584 = vrot.slane %v572, %v583
    %v585 = vcombine.high %v584, %v584
    %v587 = vunpack.c.l.s4 1966171168
    %v588 = vunpack.c.0.s8 %v587
    %v589 = vlaneseq
    %v590 = vshrl.u32 %v589, 7
    %v591 = vsub.s32 %v588, %v590
    %v592 = vrot.slane %v584, %v591
    %v594 = vunpack.c.l.s4 1966171168
    %v595 = vunpack.c.0.s8 %v594
    %v596 = vlaneseq
    %v597 = vshrl.u32 %v596, 7
    %v598 = vsub.s32 %v595, %v597
    %v599 = vrot.slane %v585, %v598
    %v600 = vlaneseq
    %v601 = vshrl.u32 %v600, 7
    %v602 = vsub.s32 0, %v601
    %v603 = vrot.slane %v592, %v602
    %v604 = vlaneseq
    %v605 = vshrl.u32 %v604, 7
    %v606 = vsub.s32 0, %v605
    %v607 = vrot.slane %v599, %v606
    %vm610 = vcmask 261120
    %v612 = vsel %vm610, %v575, 0
    %v615 = vsel %vm610, %v576, 0
    %617 = vmatprep.subr.mxu0 0.0
    %v618 = vand.u32 %v23, 4294901760
    %619 = vmatpush1.msra.mxu0 %v618
    %620 = vmatprep.subr.mxu0 0.0
    %v621 = vand.u32 %v24, 4294901760
    %622 = vmatpush1.msra.mxu0 %v621
    %623 = vmatprep.subr.mxu0 0.0
    %v624 = vand.u32 %v25, 4294901760
    %625 = vmatpush1.msra.mxu0 %v624
    %626 = vmatprep.subr.mxu0 0.0
    %v627 = vand.u32 %v26, 4294901760
    %628 = vmatpush1.msra.mxu0 %v627
    %629 = vmatprep.subr.mxu0 0.0
    %630 = vmatpush1.msra.mxu0 0.0
    %631 = vmatprep.subr.mxu0 0.0
    %632 = vmatpush1.msra.mxu0 0.0
    %633 = vmatprep.subr.mxu0 0.0
    %634 = vmatpush1.msra.mxu0 0.0
    %635 = vmatprep.subr.mxu0 0.0
    %636 = vmatpush1.msra.mxu0 0.0
    %637 = vmatprep.subr.mxu0 0.0
    %638 = vmatpush1.msra.mxu0 0.0
    %639 = vmatprep.subr.mxu0 0.0
    %640 = vmatpush1.msra.mxu0 0.0
    %641 = vmatprep.subr.mxu0 0.0
    %642 = vmatpush1.msra.mxu0 0.0
    %643 = vmatprep.subr.mxu0 0.0
    %644 = vmatpush1.msra.mxu0 0.0
    %645 = vmatprep.subr.mxu0 0.0
    %646 = vmatpush1.msra.mxu0 0.0
    %647 = vmatprep.subr.mxu0 0.0
    %648 = vmatpush1.msra.mxu0 0.0
    %649 = vmatprep.subr.mxu0 0.0
    %650 = vmatpush1.msra.mxu0 0.0
    %651 = vmatprep.subr.mxu0 0.0
    %652 = vmatpush1.msra.mxu0 0.0
    %653 = vmatprep.subr.mxu0 0.0
    %654 = vmatpush1.msra.mxu0 0.0
    %655 = vmatprep.subr.mxu0 0.0
    %656 = vmatpush1.msra.mxu0 0.0
    %657 = vmatprep.subr.mxu0 0.0
    %658 = vmatpush1.msra.mxu0 0.0
    %659 = vmatprep.subr.mxu0 0.0
    %660 = vmatpush1.msra.mxu0 0.0
    %661 = vmatprep.subr.mxu0 0.0
    %662 = vmatpush1.msra.mxu0 0.0
    %663 = vmatprep.subr.mxu0 0.0
    %664 = vmatpush1.msra.mxu0 0.0
    %665 = vmatprep.subr.mxu0 0.0
    %666 = vmatpush1.msra.mxu0 0.0
    %667 = vmatprep.subr.mxu0 0.0
    %668 = vmatpush1.msra.mxu0 0.0
    %669 = vmatprep.subr.mxu0 0.0
    %670 = vmatpush1.msra.mxu0 0.0
    %671 = vmatprep.subr.mxu0 0.0
    %672 = vmatpush1.msra.mxu0 0.0
    %673 = vmatprep.subr.mxu0 0.0
    %674 = vmatpush1.msra.mxu0 0.0
    %675 = vmatprep.subr.mxu0 0.0
    %676 = vmatpush1.msra.mxu0 0.0
    %677 = vmatprep.subr.mxu0 0.0
    %678 = vmatpush1.msra.mxu0 0.0
    %679 = vmatprep.subr.mxu0 0.0
    %680 = vmatpush1.msra.mxu0 0.0
    %681 = vmatprep.subr.mxu0 0.0
    %682 = vmatpush1.msra.mxu0 0.0
    %683 = vmatprep.subr.mxu0 0.0
    %684 = vmatpush1.msra.mxu0 0.0
    %685 = vmatprep.mubr.f32.mxu0 0.0
    %v686 = vand.u32 %v612, 4294901760
    %v687 = vsub.f32 %v612, %v686
    %v688 = vand.u32 %v687, 4294901760
    %v689 = vsub.f32 %v687, %v688
    %v690 = vand.u32 %v689, 4294901760
    %691 = vmatmul.mubr.f32.gmra.mrb[0].mxu0 %v690
    %v692 = vpop.f32.mrb[0].mxu0
    %v693 = vadd.f32 %v603, %v692
    %v694 = vpop.f32.mrb[0].mxu0
    %695 = vmatprep.mubr.f32.mxu0 0.0
    %v696 = vand.u32 %v615, 4294901760
    %v697 = vsub.f32 %v615, %v696
    %v698 = vand.u32 %v697, 4294901760
    %v699 = vsub.f32 %v697, %v698
    %v700 = vand.u32 %v699, 4294901760
    %701 = vmatmul.mubr.f32.gmra.mrb[0].mxu0 %v700
    %v702 = vpop.f32.mrb[0].mxu0
    %v703 = vadd.f32 %v607, %v702
    %v704 = vpop.f32.mrb[0].mxu0
    %705 = vdwg.mxu0
    %706 = vmatprep.subr.mxu0 0.0
    %v707 = vand.u32 %v23, 4294901760
    %v708 = vsub.f32 %v23, %v707
    %v709 = vand.u32 %v708, 4294901760
    %v710 = vsub.f32 %v708, %v709
    %v711 = vand.u32 %v710, 4294901760
    %712 = vmatpush1.msra.mxu0 %v711
    %713 = vmatprep.subr.mxu0 0.0
    %v714 = vand.u32 %v24, 4294901760
    %v715 = vsub.f32 %v24, %v714
    %v716 = vand.u32 %v715, 4294901760
    %v717 = vsub.f32 %v715, %v716
    %v718 = vand.u32 %v717, 4294901760
    %719 = vmatpush1.msra.mxu0 %v718
    %720 = vmatprep.subr.mxu0 0.0
    %v721 = vand.u32 %v25, 4294901760
    %v722 = vsub.f32 %v25, %v721
    %v723 = vand.u32 %v722, 4294901760
    %v724 = vsub.f32 %v722, %v723
    %v725 = vand.u32 %v724, 4294901760
    %726 = vmatpush1.msra.mxu0 %v725
    %727 = vmatprep.subr.mxu0 0.0
    %v728 = vand.u32 %v26, 4294901760
    %v729 = vsub.f32 %v26, %v728
    %v730 = vand.u32 %v729, 4294901760
    %v731 = vsub.f32 %v729, %v730
    %v732 = vand.u32 %v731, 4294901760
    %733 = vmatpush1.msra.mxu0 %v732
    %734 = vmatprep.subr.mxu0 0.0
    %735 = vmatpush1.msra.mxu0 0.0
    %736 = vmatprep.subr.mxu0 0.0
    %737 = vmatpush1.msra.mxu0 0.0
    %738 = vmatprep.subr.mxu0 0.0
    %739 = vmatpush1.msra.mxu0 0.0
    %740 = vmatprep.subr.mxu0 0.0
    %741 = vmatpush1.msra.mxu0 0.0
    %742 = vmatprep.subr.mxu0 0.0
    %743 = vmatpush1.msra.mxu0 0.0
    %744 = vmatprep.subr.mxu0 0.0
    %745 = vmatpush1.msra.mxu0 0.0
    %746 = vmatprep.subr.mxu0 0.0
    %747 = vmatpush1.msra.mxu0 0.0
    %748 = vmatprep.subr.mxu0 0.0
    %749 = vmatpush1.msra.mxu0 0.0
    %750 = vmatprep.subr.mxu0 0.0
    %751 = vmatpush1.msra.mxu0 0.0
    %752 = vmatprep.subr.mxu0 0.0
    %753 = vmatpush1.msra.mxu0 0.0
    %754 = vmatprep.subr.mxu0 0.0
    %755 = vmatpush1.msra.mxu0 0.0
    %756 = vmatprep.subr.mxu0 0.0
    %757 = vmatpush1.msra.mxu0 0.0
    %758 = vmatprep.subr.mxu0 0.0
    %759 = vmatpush1.msra.mxu0 0.0
    %760 = vmatprep.subr.mxu0 0.0
    %761 = vmatpush1.msra.mxu0 0.0
    %762 = vmatprep.subr.mxu0 0.0
    %763 = vmatpush1.msra.mxu0 0.0
    %764 = vmatprep.subr.mxu0 0.0
    %765 = vmatpush1.msra.mxu0 0.0
    %766 = vmatprep.subr.mxu0 0.0
    %767 = vmatpush1.msra.mxu0 0.0
    %768 = vmatprep.subr.mxu0 0.0
    %769 = vmatpush1.msra.mxu0 0.0
    %770 = vmatprep.subr.mxu0 0.0
    %771 = vmatpush1.msra.mxu0 0.0
    %772 = vmatprep.subr.mxu0 0.0
    %773 = vmatpush1.msra.mxu0 0.0
    %774 = vmatprep.subr.mxu0 0.0
    %775 = vmatpush1.msra.mxu0 0.0
    %776 = vmatprep.subr.mxu0 0.0
    %777 = vmatpush1.msra.mxu0 0.0
    %778 = vmatprep.subr.mxu0 0.0
    %779 = vmatpush1.msra.mxu0 0.0
    %780 = vmatprep.subr.mxu0 0.0
    %781 = vmatpush1.msra.mxu0 0.0
    %782 = vmatprep.subr.mxu0 0.0
    %783 = vmatpush1.msra.mxu0 0.0
    %784 = vmatprep.subr.mxu0 0.0
    %785 = vmatpush1.msra.mxu0 0.0
    %786 = vmatprep.subr.mxu0 0.0
    %787 = vmatpush1.msra.mxu0 0.0
    %788 = vmatprep.subr.mxu0 0.0
    %789 = vmatpush1.msra.mxu0 0.0
    %790 = vmatprep.mubr.f32.mxu0 0.0
    %v791 = vand.u32 %v612, 4294901760
    %792 = vmatmul.mubr.f32.gmra.mrb[0].mxu0 %v791
    %v793 = vpop.f32.mrb[0].mxu0
    %v794 = vadd.f32 %v693, %v793
    %v795 = vpop.f32.mrb[0].mxu0
    %796 = vmatprep.mubr.f32.mxu0 0.0
    %v797 = vand.u32 %v615, 4294901760
    %798 = vmatmul.mubr.f32.gmra.mrb[0].mxu0 %v797
    %v799 = vpop.f32.mrb[0].mxu0
    %v800 = vadd.f32 %v703, %v799
    %v801 = vpop.f32.mrb[0].mxu0
    %802 = vdwg.mxu0
    %803 = vmatprep.subr.mxu0 0.0
    %v804 = vand.u32 %v23, 4294901760
    %v805 = vsub.f32 %v23, %v804
    %806 = vmatpush1.msra.mxu0 %v805
    %807 = vmatprep.subr.mxu0 0.0
    %v808 = vand.u32 %v24, 4294901760
    %v809 = vsub.f32 %v24, %v808
    %810 = vmatpush1.msra.mxu0 %v809
    %811 = vmatprep.subr.mxu0 0.0
    %v812 = vand.u32 %v25, 4294901760
    %v813 = vsub.f32 %v25, %v812
    %814 = vmatpush1.msra.mxu0 %v813
    %815 = vmatprep.subr.mxu0 0.0
    %v816 = vand.u32 %v26, 4294901760
    %v817 = vsub.f32 %v26, %v816
    %818 = vmatpush1.msra.mxu0 %v817
    %819 = vmatprep.subr.mxu0 0.0
    %820 = vmatpush1.msra.mxu0 0.0
    %821 = vmatprep.subr.mxu0 0.0
    %822 = vmatpush1.msra.mxu0 0.0
    %823 = vmatprep.subr.mxu0 0.0
    %824 = vmatpush1.msra.mxu0 0.0
    %825 = vmatprep.subr.mxu0 0.0
    %826 = vmatpush1.msra.mxu0 0.0
    %827 = vmatprep.subr.mxu0 0.0
    %828 = vmatpush1.msra.mxu0 0.0
    %829 = vmatprep.subr.mxu0 0.0
    %830 = vmatpush1.msra.mxu0 0.0
    %831 = vmatprep.subr.mxu0 0.0
    %832 = vmatpush1.msra.mxu0 0.0
    %833 = vmatprep.subr.mxu0 0.0
    %834 = vmatpush1.msra.mxu0 0.0
    %835 = vmatprep.subr.mxu0 0.0
    %836 = vmatpush1.msra.mxu0 0.0
    %837 = vmatprep.subr.mxu0 0.0
    %838 = vmatpush1.msra.mxu0 0.0
    %839 = vmatprep.subr.mxu0 0.0
    %840 = vmatpush1.msra.mxu0 0.0
    %841 = vmatprep.subr.mxu0 0.0
    %842 = vmatpush1.msra.mxu0 0.0
    %843 = vmatprep.subr.mxu0 0.0
    %844 = vmatpush1.msra.mxu0 0.0
    %845 = vmatprep.subr.mxu0 0.0
    %846 = vmatpush1.msra.mxu0 0.0
    %847 = vmatprep.subr.mxu0 0.0
    %848 = vmatpush1.msra.mxu0 0.0
    %849 = vmatprep.subr.mxu0 0.0
    %850 = vmatpush1.msra.mxu0 0.0
    %851 = vmatprep.subr.mxu0 0.0
    %852 = vmatpush1.msra.mxu0 0.0
    %853 = vmatprep.subr.mxu0 0.0
    %854 = vmatpush1.msra.mxu0 0.0
    %855 = vmatprep.subr.mxu0 0.0
    %856 = vmatpush1.msra.mxu0 0.0
    %857 = vmatprep.subr.mxu0 0.0
    %858 = vmatpush1.msra.mxu0 0.0
    %859 = vmatprep.subr.mxu0 0.0
    %860 = vmatpush1.msra.mxu0 0.0
    %861 = vmatprep.subr.mxu0 0.0
    %862 = vmatpush1.msra.mxu0 0.0
    %863 = vmatprep.subr.mxu0 0.0
    %864 = vmatpush1.msra.mxu0 0.0
    %865 = vmatprep.subr.mxu0 0.0
    %866 = vmatpush1.msra.mxu0 0.0
    %867 = vmatprep.subr.mxu0 0.0
    %868 = vmatpush1.msra.mxu0 0.0
    %869 = vmatprep.subr.mxu0 0.0
    %870 = vmatpush1.msra.mxu0 0.0
    %871 = vmatprep.subr.mxu0 0.0
    %872 = vmatpush1.msra.mxu0 0.0
    %873 = vmatprep.subr.mxu0 0.0
    %874 = vmatpush1.msra.mxu0 0.0
    %875 = vmatprep.mubr.f32.mxu0 0.0
    %v876 = vand.u32 %v612, 4294901760
    %v877 = vsub.f32 %v612, %v876
    %878 = vmatmul.mubr.f32.gmra.mrb[0].mxu0 %v877
    %v879 = vpop.f32.mrb[0].mxu0
    %v880 = vadd.f32 %v794, %v879
    %v881 = vpop.f32.mrb[0].mxu0
    %882 = vmatprep.mubr.f32.mxu0 0.0
    %v883 = vand.u32 %v615, 4294901760
    %v884 = vsub.f32 %v615, %v883
    %885 = vmatmul.mubr.f32.gmra.mrb[0].mxu0 %v884
    %v886 = vpop.f32.mrb[0].mxu0
    %v887 = vadd.f32 %v800, %v886
    %v888 = vpop.f32.mrb[0].mxu0
    %889 = vdwg.mxu0
    %890 = vmatprep.subr.mxu0 0.0
    %v891 = vand.u32 %v23, 4294901760
    %892 = vmatpush1.msra.mxu0 %v891
    %893 = vmatprep.subr.mxu0 0.0
    %v894 = vand.u32 %v24, 4294901760
    %895 = vmatpush1.msra.mxu0 %v894
    %896 = vmatprep.subr.mxu0 0.0
    %v897 = vand.u32 %v25, 4294901760
    %898 = vmatpush1.msra.mxu0 %v897
    %899 = vmatprep.subr.mxu0 0.0
    %v900 = vand.u32 %v26, 4294901760
    %901 = vmatpush1.msra.mxu0 %v900
    %902 = vmatprep.subr.mxu0 0.0
    %903 = vmatpush1.msra.mxu0 0.0
    %904 = vmatprep.subr.mxu0 0.0
    %905 = vmatpush1.msra.mxu0 0.0
    %906 = vmatprep.subr.mxu0 0.0
    %907 = vmatpush1.msra.mxu0 0.0
    %908 = vmatprep.subr.mxu0 0.0
    %909 = vmatpush1.msra.mxu0 0.0
    %910 = vmatprep.subr.mxu0 0.0
    %911 = vmatpush1.msra.mxu0 0.0
    %912 = vmatprep.subr.mxu0 0.0
    %913 = vmatpush1.msra.mxu0 0.0
    %914 = vmatprep.subr.mxu0 0.0
    %915 = vmatpush1.msra.mxu0 0.0
    %916 = vmatprep.subr.mxu0 0.0
    %917 = vmatpush1.msra.mxu0 0.0
    %918 = vmatprep.subr.mxu0 0.0
    %919 = vmatpush1.msra.mxu0 0.0
    %920 = vmatprep.subr.mxu0 0.0
    %921 = vmatpush1.msra.mxu0 0.0
    %922 = vmatprep.subr.mxu0 0.0
    %923 = vmatpush1.msra.mxu0 0.0
    %924 = vmatprep.subr.mxu0 0.0
    %925 = vmatpush1.msra.mxu0 0.0
    %926 = vmatprep.subr.mxu0 0.0
    %927 = vmatpush1.msra.mxu0 0.0
    %928 = vmatprep.subr.mxu0 0.0
    %929 = vmatpush1.msra.mxu0 0.0
    %930 = vmatprep.subr.mxu0 0.0
    %931 = vmatpush1.msra.mxu0 0.0
    %932 = vmatprep.subr.mxu0 0.0
    %933 = vmatpush1.msra.mxu0 0.0
    %934 = vmatprep.subr.mxu0 0.0
    %935 = vmatpush1.msra.mxu0 0.0
    %936 = vmatprep.subr.mxu0 0.0
    %937 = vmatpush1.msra.mxu0 0.0
    %938 = vmatprep.subr.mxu0 0.0
    %939 = vmatpush1.msra.mxu0 0.0
    %940 = vmatprep.subr.mxu0 0.0
    %941 = vmatpush1.msra.mxu0 0.0
    %942 = vmatprep.subr.mxu0 0.0
    %943 = vmatpush1.msra.mxu0 0.0
    %944 = vmatprep.subr.mxu0 0.0
    %945 = vmatpush1.msra.mxu0 0.0
    %946 = vmatprep.subr.mxu0 0.0
    %947 = vmatpush1.msra.mxu0 0.0
    %948 = vmatprep.subr.mxu0 0.0
    %949 = vmatpush1.msra.mxu0 0.0
    %950 = vmatprep.subr.mxu0 0.0
    %951 = vmatpush1.msra.mxu0 0.0
    %952 = vmatprep.subr.mxu0 0.0
    %953 = vmatpush1.msra.mxu0 0.0
    %954 = vmatprep.subr.mxu0 0.0
    %955 = vmatpush1.msra.mxu0 0.0
    %956 = vmatprep.subr.mxu0 0.0
    %957 = vmatpush1.msra.mxu0 0.0
    %958 = vmatprep.mubr.f32.mxu0 0.0
    %v959 = vand.u32 %v612, 4294901760
    %v960 = vsub.f32 %v612, %v959
    %v961 = vand.u32 %v960, 4294901760
    %962 = vmatmul.mubr.f32.gmra.mrb[0].mxu0 %v961
    %v963 = vpop.f32.mrb[0].mxu0
    %v964 = vadd.f32 %v880, %v963
    %v965 = vpop.f32.mrb[0].mxu0
    %966 = vmatprep.mubr.f32.mxu0 0.0
    %v967 = vand.u32 %v615, 4294901760
    %v968 = vsub.f32 %v615, %v967
    %v969 = vand.u32 %v968, 4294901760
    %970 = vmatmul.mubr.f32.gmra.mrb[0].mxu0 %v969
    %v971 = vpop.f32.mrb[0].mxu0
    %v972 = vadd.f32 %v887, %v971
    %v973 = vpop.f32.mrb[0].mxu0
    %974 = vdwg.mxu0
    %975 = vmatprep.subr.mxu0 0.0
    %v976 = vand.u32 %v23, 4294901760
    %v977 = vsub.f32 %v23, %v976
    %v978 = vand.u32 %v977, 4294901760
    %979 = vmatpush1.msra.mxu0 %v978
    %980 = vmatprep.subr.mxu0 0.0
    %v981 = vand.u32 %v24, 4294901760
    %v982 = vsub.f32 %v24, %v981
    %v983 = vand.u32 %v982, 4294901760
    %984 = vmatpush1.msra.mxu0 %v983
    %985 = vmatprep.subr.mxu0 0.0
    %v986 = vand.u32 %v25, 4294901760
    %v987 = vsub.f32 %v25, %v986
    %v988 = vand.u32 %v987, 4294901760
    %989 = vmatpush1.msra.mxu0 %v988
    %990 = vmatprep.subr.mxu0 0.0
    %v991 = vand.u32 %v26, 4294901760
    %v992 = vsub.f32 %v26, %v991
    %v993 = vand.u32 %v992, 4294901760
    %994 = vmatpush1.msra.mxu0 %v993
    %995 = vmatprep.subr.mxu0 0.0
    %996 = vmatpush1.msra.mxu0 0.0
    %997 = vmatprep.subr.mxu0 0.0
    %998 = vmatpush1.msra.mxu0 0.0
    %999 = vmatprep.subr.mxu0 0.0
    %1000 = vmatpush1.msra.mxu0 0.0
    %1001 = vmatprep.subr.mxu0 0.0
    %1002 = vmatpush1.msra.mxu0 0.0
    %1003 = vmatprep.subr.mxu0 0.0
    %1004 = vmatpush1.msra.mxu0 0.0
    %1005 = vmatprep.subr.mxu0 0.0
    %1006 = vmatpush1.msra.mxu0 0.0
    %1007 = vmatprep.subr.mxu0 0.0
    %1008 = vmatpush1.msra.mxu0 0.0
    %1009 = vmatprep.subr.mxu0 0.0
    %1010 = vmatpush1.msra.mxu0 0.0
    %1011 = vmatprep.subr.mxu0 0.0
    %1012 = vmatpush1.msra.mxu0 0.0
    %1013 = vmatprep.subr.mxu0 0.0
    %1014 = vmatpush1.msra.mxu0 0.0
    %1015 = vmatprep.subr.mxu0 0.0
    %1016 = vmatpush1.msra.mxu0 0.0
    %1017 = vmatprep.subr.mxu0 0.0
    %1018 = vmatpush1.msra.mxu0 0.0
    %1019 = vmatprep.subr.mxu0 0.0
    %1020 = vmatpush1.msra.mxu0 0.0
    %1021 = vmatprep.subr.mxu0 0.0
    %1022 = vmatpush1.msra.mxu0 0.0
    %1023 = vmatprep.subr.mxu0 0.0
    %1024 = vmatpush1.msra.mxu0 0.0
    %1025 = vmatprep.subr.mxu0 0.0
    %1026 = vmatpush1.msra.mxu0 0.0
    %1027 = vmatprep.subr.mxu0 0.0
    %1028 = vmatpush1.msra.mxu0 0.0
    %1029 = vmatprep.subr.mxu0 0.0
    %1030 = vmatpush1.msra.mxu0 0.0
    %1031 = vmatprep.subr.mxu0 0.0
    %1032 = vmatpush1.msra.mxu0 0.0
    %1033 = vmatprep.subr.mxu0 0.0
    %1034 = vmatpush1.msra.mxu0 0.0
    %1035 = vmatprep.subr.mxu0 0.0
    %1036 = vmatpush1.msra.mxu0 0.0
    %1037 = vmatprep.subr.mxu0 0.0
    %1038 = vmatpush1.msra.mxu0 0.0
    %1039 = vmatprep.subr.mxu0 0.0
    %1040 = vmatpush1.msra.mxu0 0.0
    %1041 = vmatprep.subr.mxu0 0.0
    %1042 = vmatpush1.msra.mxu0 0.0
    %1043 = vmatprep.subr.mxu0 0.0
    %1044 = vmatpush1.msra.mxu0 0.0
    %1045 = vmatprep.subr.mxu0 0.0
    %1046 = vmatpush1.msra.mxu0 0.0
    %1047 = vmatprep.subr.mxu0 0.0
    %1048 = vmatpush1.msra.mxu0 0.0
    %1049 = vmatprep.subr.mxu0 0.0
    %1050 = vmatpush1.msra.mxu0 0.0
    %1051 = vmatprep.mubr.f32.mxu0 0.0
    %v1052 = vand.u32 %v612, 4294901760
    %1053 = vmatmul.mubr.f32.gmra.mrb[0].mxu0 %v1052
    %v1054 = vpop.f32.mrb[0].mxu0
    %v1055 = vadd.f32 %v964, %v1054
    %v1056 = vpop.f32.mrb[0].mxu0
    %1057 = vmatprep.mubr.f32.mxu0 0.0
    %v1058 = vand.u32 %v615, 4294901760
    %1059 = vmatmul.mubr.f32.gmra.mrb[0].mxu0 %v1058
    %v1060 = vpop.f32.mrb[0].mxu0
    %v1061 = vadd.f32 %v972, %v1060
    %v1062 = vpop.f32.mrb[0].mxu0
    %1063 = vdwg.mxu0
    %1064 = vmatprep.subr.mxu0 0.0
    %v1065 = vand.u32 %v23, 4294901760
    %1066 = vmatpush1.msra.mxu0 %v1065
    %1067 = vmatprep.subr.mxu0 0.0
    %v1068 = vand.u32 %v24, 4294901760
    %1069 = vmatpush1.msra.mxu0 %v1068
    %1070 = vmatprep.subr.mxu0 0.0
    %v1071 = vand.u32 %v25, 4294901760
    %1072 = vmatpush1.msra.mxu0 %v1071
    %1073 = vmatprep.subr.mxu0 0.0
    %v1074 = vand.u32 %v26, 4294901760
    %1075 = vmatpush1.msra.mxu0 %v1074
    %1076 = vmatprep.subr.mxu0 0.0
    %1077 = vmatpush1.msra.mxu0 0.0
    %1078 = vmatprep.subr.mxu0 0.0
    %1079 = vmatpush1.msra.mxu0 0.0
    %1080 = vmatprep.subr.mxu0 0.0
    %1081 = vmatpush1.msra.mxu0 0.0
    %1082 = vmatprep.subr.mxu0 0.0
    %1083 = vmatpush1.msra.mxu0 0.0
    %1084 = vmatprep.subr.mxu0 0.0
    %1085 = vmatpush1.msra.mxu0 0.0
    %1086 = vmatprep.subr.mxu0 0.0
    %1087 = vmatpush1.msra.mxu0 0.0
    %1088 = vmatprep.subr.mxu0 0.0
    %1089 = vmatpush1.msra.mxu0 0.0
    %1090 = vmatprep.subr.mxu0 0.0
    %1091 = vmatpush1.msra.mxu0 0.0
    %1092 = vmatprep.subr.mxu0 0.0
    %1093 = vmatpush1.msra.mxu0 0.0
    %1094 = vmatprep.subr.mxu0 0.0
    %1095 = vmatpush1.msra.mxu0 0.0
    %1096 = vmatprep.subr.mxu0 0.0
    %1097 = vmatpush1.msra.mxu0 0.0
    %1098 = vmatprep.subr.mxu0 0.0
    %1099 = vmatpush1.msra.mxu0 0.0
    %1100 = vmatprep.subr.mxu0 0.0
    %1101 = vmatpush1.msra.mxu0 0.0
    %1102 = vmatprep.subr.mxu0 0.0
    %1103 = vmatpush1.msra.mxu0 0.0
    %1104 = vmatprep.subr.mxu0 0.0
    %1105 = vmatpush1.msra.mxu0 0.0
    %1106 = vmatprep.subr.mxu0 0.0
    %1107 = vmatpush1.msra.mxu0 0.0
    %1108 = vmatprep.subr.mxu0 0.0
    %1109 = vmatpush1.msra.mxu0 0.0
    %1110 = vmatprep.subr.mxu0 0.0
    %1111 = vmatpush1.msra.mxu0 0.0
    %1112 = vmatprep.subr.mxu0 0.0
    %1113 = vmatpush1.msra.mxu0 0.0
    %1114 = vmatprep.subr.mxu0 0.0
    %1115 = vmatpush1.msra.mxu0 0.0
    %1116 = vmatprep.subr.mxu0 0.0
    %1117 = vmatpush1.msra.mxu0 0.0
    %1118 = vmatprep.subr.mxu0 0.0
    %1119 = vmatpush1.msra.mxu0 0.0
    %1120 = vmatprep.subr.mxu0 0.0
    %1121 = vmatpush1.msra.mxu0 0.0
    %1122 = vmatprep.subr.mxu0 0.0
    %1123 = vmatpush1.msra.mxu0 0.0
    %1124 = vmatprep.subr.mxu0 0.0
    %1125 = vmatpush1.msra.mxu0 0.0
    %1126 = vmatprep.subr.mxu0 0.0
    %1127 = vmatpush1.msra.mxu0 0.0
    %1128 = vmatprep.subr.mxu0 0.0
    %1129 = vmatpush1.msra.mxu0 0.0
    %1130 = vmatprep.subr.mxu0 0.0
    %1131 = vmatpush1.msra.mxu0 0.0
    %1132 = vmatprep.mubr.f32.mxu0 0.0
    %v1133 = vand.u32 %v612, 4294901760
    %1134 = vmatmul.mubr.f32.gmra.mrb[0].mxu0 %v1133
    %v1135 = vpop.f32.mrb[0].mxu0
    %v1136 = vadd.f32 %v1055, %v1135
    %v1137 = vpop.f32.mrb[0].mxu0
    %1138 = vmatprep.mubr.f32.mxu0 0.0
    %v1139 = vand.u32 %v615, 4294901760
    %1140 = vmatmul.mubr.f32.gmra.mrb[0].mxu0 %v1139
    %v1141 = vpop.f32.mrb[0].mxu0
    %v1142 = vadd.f32 %v1061, %v1141
    %v1143 = vpop.f32.mrb[0].mxu0
    %1144 = vdwg.mxu0
    %v1145 = vtanh.pop %v1136
    %v1146 = vtanh.pop %v1142
    %v1147 = vlaneseq
    %v1148 = vshrl.u32 %v1147, 7
    %v1149 = vsub.s32 0, %v1148
    %v1150 = vrot.slane %v28, %v1149
    %v1151 = vmul.f32 %v1145, %v1150
    %v1152 = vmul.f32 %v1146, %v1150
    %v1153 = vsel %vm610, %v1151, 0.0
    %1154 = vadd.xlane.f32.xlu0 %v1153
    %v1155 = vpop.xlane.xlu0 %1154
    %v1156 = vsel %vm610, %v1152, 0.0
    %1157 = vadd.xlane.f32.xlu0 %v1156
    %v1158 = vpop.xlane.xlu0 %1157
    %v1161 = vlaneseq
    %v1162 = vand.u32 %v1161, 127
    %v1163 = vlaneseq
    %v1164 = vshrl.u32 %v1163, 7
    %v1165 = vsub.s32 %v1162, %v1164
    %v1166 = vrot.slane %v1155, %v1165
    %v1167 = vlaneseq
    %v1168 = vshrl.u32 %v1167, 7
    %v1169 = vsub.s32 %v1162, %v1168
    %v1170 = vrot.slane %v1158, %v1169
    %vm1171 = vcmask 1041409
    %v1172 = vsel %vm1171, %v1170, %v1166
    %vm1174 = vcmask 58368
    %v1175 = vsel %vm1174, %v1172, -inf
    %1176 = vmax.xlane.f32.xlu0 %v1175
    %v1177 = vpop.xlane.xlu0 %1176
    %v1179 = vlaneseq
    %v1180 = vshrl.u32 %v1179, 7
    %v1181 = vsub.s32 0, %v1180
    %v1182 = vrot.slane %v1177, %v1181
    %v1183 = vlaneseq
    %v1184 = vshrl.u32 %v1183, 7
    %v1185 = vsub.s32 1, %v1184
    %v1186 = vrot.slane %v1177, %v1185
    %v1189 = vsub.f32 %v1155, %v1182
    %v1190 = vsub.f32 %v1158, %v1186
    %v1191 = vmul.f32 %v1189, 1.442695
    %v1192 = vpow.pop %v1191
    %v1193 = vmul.f32 %v1190, 1.442695
    %v1194 = vpow.pop %v1193
    %1197 = vset.pattern.permute.xlu0 0
    %1198 = vperm.xlu0 %1197, %v1192
    %v1199 = vpop.permute.xlu0 %1198
    %1200 = vset.pattern.permute.xlu0 0
    %1201 = vperm.xlu0 %1200, %v1194
    %v1202 = vpop.permute.xlu0 %1201
    %v1203 = vlaneseq
    %v1204 = vshrl.u32 %v1203, 7
    %v1205 = vsub.s32 %v1162, %v1204
    %v1206 = vrot.slane %v1199, %v1205
    %v1207 = vlaneseq
    %v1208 = vshrl.u32 %v1207, 7
    %v1209 = vsub.s32 %v1162, %v1208
    %v1210 = vrot.slane %v1202, %v1209
    %v1211 = vsel %vm1171, %v1210, %v1206
    %v1213 = vsel %vm1174, %v1211, 0.0
    %1214 = vadd.xlane.f32.xlu0 %v1213
    %v1215 = vpop.xlane.xlu0 %1214
    %v1217 = vlaneseq
    %v1218 = vshrl.u32 %v1217, 7
    %v1219 = vsub.s32 0, %v1218
    %v1220 = vrot.slane %v1215, %v1219
    %v1221 = vlaneseq
    %v1222 = vshrl.u32 %v1221, 7
    %v1223 = vsub.s32 1, %v1222
    %v1224 = vrot.slane %v1215, %v1223
    %v1227 = vrcp.pop %v1220
    %v1228 = vmul.f32 %v1192, %v1227
    %v1229 = vrcp.pop %v1224
    %v1230 = vmul.f32 %v1194, %v1229
    %1233 = vset.pattern.permute.xlu0 0
    %1234 = vperm.xlu0 %1233, %v1228
    %v1235 = vpop.permute.xlu0 %1234
    %1236 = vset.pattern.permute.xlu0 0
    %1237 = vperm.xlu0 %1236, %v1230
    %v1238 = vpop.permute.xlu0 %1237
    %v1239 = vlaneseq
    %v1240 = vshrl.u32 %v1239, 7
    %v1241 = vsub.s32 %v1162, %v1240
    %v1242 = vrot.slane %v1235, %v1241
    %v1243 = vlaneseq
    %v1244 = vshrl.u32 %v1243, 7
    %v1245 = vsub.s32 %v1162, %v1244
    %v1246 = vrot.slane %v1238, %v1245
    %v1247 = vsel %vm1171, %v1246, %v1242
    %1249 = vst.msk [vmem:[#allocation2] sm:$0x3] %vm1174, %v1247
    // Predicated region
    $region14: #{tpu_custom_call.1} parent=1 // pred_check
      _
    $region15: #{tpu_custom_call.1} parent=1 // pred_check_branch
      %1251 = sbr.rel (0) target = $region17
    $region16: #{tpu_custom_call.1} parent=1 // pred_region
      %s1253 = ssub.s32 32, 32
      %1254 = vsyncadd [#allocation3], %s1253
      %s1256 = sshll.u32 [#allocation2], 4
      %s1257 = int_to_ptr.vmem [resolvable:$true] %s1256
      %1259 = dma.vmem_to_hbm [thread:$0]  %s1257, 32, %s3, [#allocation3]
    $region17: #{tpu_custom_call.1} parent=1 // pred_fallthru
      _
    // Predicated region
    $region18: #{tpu_custom_call.1} parent=1 // pred_check
      _
    $region19: #{tpu_custom_call.1} parent=1 // pred_check_branch
      %1261 = sbr.rel (0) target = $region21
    $region20: #{tpu_custom_call.1} parent=1 // pred_region
      %1262 = dma.done [#allocation3], 32
    $region21: #{tpu_custom_call.1} parent=1 // pred_fallthru
      _
    %1263 = vsyncpa [#allocation3], 1

</llo_original>
